<compile_context>
chip_gen: v7x
topology: tpu7x:2x2x1
jax: 0.10.0
libtpu: 0.0.40
codegen_flags: <defaults>
</compile_context>

<pallas_src>
import functools

import jax
import jax.numpy as jnp
from jax import lax
from jax.experimental import pallas as pl
from jax.experimental.pallas import tpu as pltpu


def _round_up(v, m):
    return (v + m - 1) // m * m


# Working-set budget kept v7x-safe (64 MiB physical VMEM per TensorCore).
_VMEM_BUDGET = 40 * 1024 * 1024


def _node_spatial_average_kernel(kb_ref, kc_ref, dst_ref, edge_attr_ref, x_ref,
                                 out_ref, cnt_ref, *, precision):
    # kb_ref/kc_ref:  [n_tiles] int32 SMEM  per-node-tile E-tile range (begin, count)
    # dst_ref:        [1, tE]   int32       destination node ids (lane-dense)
    # edge_attr_ref:  [tE, Fp]  f32/bf16    edge features (zero-padded)
    # x_ref:          [tN, Fp]  f32         node features (zero-padded)
    # out_ref:        [tN, Fp]  f32         sums accumulator, then final output
    # cnt_ref:        [tN, 1]   f32 scratch per-node incoming-edge counts
    n = pl.program_id(0)
    k = pl.program_id(1)

    @pl.when(k == 0)
    def _init():
        out_ref[...] = jnp.zeros_like(out_ref)
        cnt_ref[...] = jnp.zeros_like(cnt_ref)

    t_n = out_ref.shape[0]
    t_e = dst_ref.shape[1]

    # Only E tiles inside this node tile's edge range do any work; the
    # index_map clamps to the same tile index outside the range, so the
    # pipeline also skips the redundant DMAs.
    @pl.when(k < kc_ref[n])
    def _accumulate():
        # Cheap one-hot: (tN,1) iota column vs offset-folded (1,tE) dst row.
        row_ids = lax.broadcasted_iota(jnp.int32, (t_n, 1), 0)
        dst_local = dst_ref[...] - n * t_n
        one_hot = (row_ids == dst_local).astype(jnp.float32)          # (tN, tE)

        # Counts on the (otherwise idle) XLU slot; exact up to 2^24 edges/node.
        cnt_ref[...] += jnp.sum(one_hot, axis=1, keepdims=True)

        # Canonical (M,K)x(K,N) MXU contraction accumulated into the resident
        # output block (f32).
        lhs = one_hot.astype(edge_attr_ref.dtype)
        out_ref[...] += jnp.dot(lhs, edge_attr_ref[...],
                                preferred_element_type=jnp.float32,
                                precision=precision)

    @pl.when(k == pl.num_programs(1) - 1)
    def _finalize():
        mean = out_ref[...] / jnp.maximum(cnt_ref[...], 1.0)   # 0 for edge-less nodes
        out_ref[...] = (mean + x_ref[...]) * 0.5


def node_spatial_average(x, edge_index, edge_attr, *, tile_n=1024, tile_e=1024,
                         use_bf16=False,
                         precision=jax.lax.Precision.HIGHEST):
    """x: [N, F], edge_index: [2, E] int, edge_attr: [E, F] -> [N, F] f32."""
    N, F = x.shape
    E = edge_attr.shape[0]

    if E == 0:  # scatter_mean with no edges is all zeros -> (0 + x) / 2
        return x.astype(jnp.float32) * 0.5

    # ---- sort edges by destination so each node tile sees a contiguous range.
    dst_raw = edge_index[1].astype(jnp.int32)
    order = jnp.argsort(dst_raw)
    dst_sorted = dst_raw[order]
    ea_dtype = jnp.bfloat16 if use_bf16 else jnp.float32
    ea_sorted = edge_attr.astype(ea_dtype)[order]

    # ---- tile sizes: lane-dense feature axis, (8,128)-aligned tiles.
    f_pad = _round_up(F, 128)
    t_n = min(tile_n, _round_up(N, 8))
    if N >= 16 and _round_up(N, t_n) == t_n:
        # A single N tile would idle one TensorCore on v7x; split once.  With
        # sorted-edge k-ranges this costs ~nothing in extra edge_attr traffic.
        t_n = _round_up((N + 1) // 2, 8)
    t_e = min(tile_e, _round_up(E, 128))

    itemsize = 2 if use_bf16 else 4

    def _vmem_bytes(tn, te):
        return (2 * te * f_pad * itemsize   # edge_attr (double-buffered)
                + 2 * tn * f_pad * 4        # x
                + 2 * tn * f_pad * 4        # out
                + 2 * te * 4                # dst
                + tn * 128 * 4              # counts scratch (lane-padded)
                + 2 * tn * te * 4)          # one-hot temporaries

    while _vmem_bytes(t_n, t_e) > _VMEM_BUDGET and t_e > 128:
        t_e = max(128, _round_up(t_e // 2, 128))
    while _vmem_bytes(t_n, t_e) > _VMEM_BUDGET and t_n > 8:
        t_n = max(8, _round_up(t_n // 2, 8))

    n_pad = _round_up(N, t_n)
    e_pad = _round_up(E, t_e)
    n_tiles = n_pad // t_n
    e_tiles = e_pad // t_e

    # ---- per-node-tile [k_begin, k_begin + k_count) E-tile ranges (scalar prefetch).
    bounds = jnp.arange(n_tiles + 1, dtype=jnp.int32) * t_n
    pos = jnp.searchsorted(dst_sorted, bounds, side="left").astype(jnp.int32)
    e_lo, e_hi = pos[:-1], pos[1:]
    k_begin = jnp.clip(e_lo // t_e, 0, e_tiles - 1).astype(jnp.int32)
    k_end = (e_hi + t_e - 1) // t_e
    k_count = jnp.where(e_hi > e_lo, k_end - k_begin, 0).astype(jnp.int32)

    # Static inner-grid extent: tight bound when inputs are concrete,
    # conservative worst case under tracing (jit).
    try:
        k_extent = max(int(jnp.max(k_count)), 1)
    except jax.errors.ConcretizationTypeError:
        k_extent = e_tiles

    # ---- padded, lane-dense operands (single jnp.pad each; no zeros+set chains).
    ea = jnp.pad(ea_sorted, ((0, e_pad - E), (0, f_pad - F)))
    dst = jnp.pad(dst_sorted, (0, e_pad - E), constant_values=-1).reshape(1, e_pad)
    xp = jnp.pad(x.astype(jnp.float32), ((0, n_pad - N), (0, f_pad - F)))

    def _k_of(n, k, kb, kc):
        # Clamp to the node tile's last valid E tile; repeated indices make the
        # pipeline skip the DMA and pl.when skips the compute.
        return kb[n] + jnp.minimum(k, jnp.maximum(kc[n] - 1, 0))

    out = pl.pallas_call(
        functools.partial(_node_spatial_average_kernel, precision=precision),
        out_shape=jax.ShapeDtypeStruct((n_pad, f_pad), jnp.float32),
        grid_spec=pltpu.PrefetchScalarGridSpec(
            num_scalar_prefetch=2,
            grid=(n_tiles, k_extent),   # N tiles (parallel), E tiles (reduction)
            in_specs=[
                pl.BlockSpec((1, t_e),
                             lambda n, k, kb, kc: (0, _k_of(n, k, kb, kc))),
                pl.BlockSpec((t_e, f_pad),
                             lambda n, k, kb, kc: (_k_of(n, k, kb, kc), 0)),
                pl.BlockSpec((t_n, f_pad), lambda n, k, kb, kc: (n, 0)),
            ],
            out_specs=pl.BlockSpec((t_n, f_pad), lambda n, k, kb, kc: (n, 0)),
            scratch_shapes=[pltpu.VMEM((t_n, 1), jnp.float32)],
        ),
        compiler_params=pltpu.CompilerParams(
            dimension_semantics=("parallel", "arbitrary"),
            vmem_limit_bytes=48 * 1024 * 1024,   # safe on v7x (64 MiB physical)
        ),
    )(k_begin, k_count, dst, ea, xp)

    return out[:N, :F]


def _reference(x, edge_index, edge_attr):
    N = x.shape[0]
    dst = edge_index[1]
    sums = jax.ops.segment_sum(edge_attr, dst, num_segments=N)
    counts = jax.ops.segment_sum(jnp.ones((edge_attr.shape[0],), jnp.float32),
                                 dst, num_segments=N)
    mean = sums / jnp.maximum(counts, 1.0)[:, None]
    return (mean + x) / 2.0


if __name__ == "__main__":
    key = jax.random.PRNGKey(0)
    k1, k2, k3, k4 = jax.random.split(key, 4)

    N, F, E = 16, 8, 32  # small graph: 16 nodes, 8 features, 32 edges
    x = jax.random.normal(k1, (N, F), dtype=jnp.float32)
    edge_attr = jax.random.normal(k2, (E, F), dtype=jnp.float32)
    src = jax.random.randint(k3, (E,), 0, N, dtype=jnp.int32)
    dst = jax.random.randint(k4, (E,), 0, N, dtype=jnp.int32)
    edge_index = jnp.stack([src, dst], axis=0)  # [2, E]

    out = node_spatial_average(x, edge_index, edge_attr)
    out = jax.block_until_ready(out)

    ref = _reference(x, edge_index, edge_attr)
    assert out.shape == (N, F)
    err = float(jnp.max(jnp.abs(out - ref)))
    assert jnp.allclose(out, ref, atol=1e-5, rtol=1e-5), f"max abs err = {err}"

    print("KERNEL_OK")
</pallas_src>

<mosaic_0001>
module attributes {stable_mosaic.version = 11 : i64} {
  func.func @_node_spatial_average_kernel(%arg0: i32, %arg1: i32, %arg2: memref<2xi32, #tpu.memory_space<smem>>, %arg3: memref<2xi32, #tpu.memory_space<smem>>, %arg4: memref<1x128xi32, #tpu.memory_space<vmem>>, %arg5: memref<128x128xf32, #tpu.memory_space<vmem>>, %arg6: memref<8x128xf32, #tpu.memory_space<vmem>>, %arg7: memref<8x128xf32, #tpu.memory_space<vmem>>, %arg8: memref<8x1xf32, #tpu.memory_space<vmem>>) attributes {dimension_semantics = [#tpu.dimension_semantics<parallel>, #tpu.dimension_semantics<arbitrary>], iteration_bounds = array<i64: 2, 1>, scalar_prefetch = 2 : i64, scratch_operands = 1 : i64, tpu.core_type = #tpu.core_type<tc>, window_params = [{transform_indices = @transform_0, window_bounds = array<i64: 1, 128>}, {transform_indices = @transform_1, window_bounds = array<i64: 128, 128>}, {transform_indices = @transform_2, window_bounds = array<i64: 8, 128>}, {transform_indices = @transform_3, window_bounds = array<i64: 8, 128>}]} {
    %c0_i32 = arith.constant 0 : i32
    %0 = arith.cmpi eq, %arg1, %c0_i32 : i32
    %1 = arith.extui %0 : i1 to i32
    %c0_i32_0 = arith.constant 0 : i32
    %2 = arith.cmpi ne, %1, %c0_i32_0 : i32
    scf.if %2 {
      %cst = arith.constant 0.000000e+00 : f32
      %11 = vector.broadcast %cst : f32 to vector<8x128xf32>
      %c0 = arith.constant 0 : index
      %c0_4 = arith.constant 0 : index
      %12 = vector.load %arg7[%c0, %c0_4] : memref<8x128xf32, #tpu.memory_space<vmem>>, vector<8x128xf32>
      tpu.vector_store %arg7[%c0, %c0_4], %11 {strides = array<i32>} : memref<8x128xf32, #tpu.memory_space<vmem>>, vector<8x128xf32>,
      %cst_5 = arith.constant 0.000000e+00 : f32
      %13 = vector.broadcast %cst_5 : f32 to vector<8x1xf32>
      %c0_6 = arith.constant 0 : index
      %c0_7 = arith.constant 0 : index
      %14 = vector.load %arg8[%c0_6, %c0_7] : memref<8x1xf32, #tpu.memory_space<vmem>>, vector<8x1xf32>
      tpu.vector_store %arg8[%c0_6, %c0_7], %13 {strides = array<i32>} : memref<8x1xf32, #tpu.memory_space<vmem>>, vector<8x1xf32>,
    } else {
    }
    %3 = arith.index_cast %arg0 : i32 to index
    %4 = memref.load %arg3[%3] : memref<2xi32, #tpu.memory_space<smem>>
    %5 = arith.cmpi slt, %arg1, %4 : i32
    %6 = arith.extui %5 : i1 to i32
    %c0_i32_1 = arith.constant 0 : i32
    %7 = arith.cmpi ne, %6, %c0_i32_1 : i32
    scf.if %7 {
      %11 = tpu.iota {dimensions = array<i32: 0>} : vector<8x1xi32>
      %c0 = arith.constant 0 : index
      %c0_4 = arith.constant 0 : index
      %12 = vector.load %arg4[%c0, %c0_4] : memref<1x128xi32, #tpu.memory_space<vmem>>, vector<1x128xi32>
      %c8_i32 = arith.constant 8 : i32
      %13 = arith.muli %arg0, %c8_i32 : i32
      %14 = vector.broadcast %13 : i32 to vector<1x128xi32>
      %15 = arith.subi %12, %14 : vector<1x128xi32>
      %16 = vector.broadcast %11 : vector<8x1xi32> to vector<8x128xi32>
      %17 = vector.broadcast %15 : vector<1x128xi32> to vector<8x128xi32>
      %18 = arith.cmpi eq, %16, %17 : vector<8x128xi32>
      %19 = arith.extui %18 : vector<8x128xi1> to vector<8x128xi32>
      %20 = arith.sitofp %19 : vector<8x128xi32> to vector<8x128xf32>
      %c0_5 = arith.constant 0 : index
      %c0_6 = arith.constant 0 : index
      %21 = vector.load %arg8[%c0_5, %c0_6] : memref<8x1xf32, #tpu.memory_space<vmem>>, vector<8x1xf32>
      %cst = arith.constant dense<0.000000e+00> : vector<8xf32>
      %22 = vector.multi_reduction <add>, %20, %cst [1] : vector<8x128xf32> to vector<8xf32>
      %23 = vector.shape_cast %22 : vector<8xf32> to vector<8x1xf32>
      %24 = arith.addf %21, %23 : vector<8x1xf32>
      %c0_7 = arith.constant 0 : index
      %c0_8 = arith.constant 0 : index
      %25 = vector.load %arg8[%c0_7, %c0_8] : memref<8x1xf32, #tpu.memory_space<vmem>>, vector<8x1xf32>
      tpu.vector_store %arg8[%c0_7, %c0_8], %24 {strides = array<i32>} : memref<8x1xf32, #tpu.memory_space<vmem>>, vector<8x1xf32>,
      %c0_9 = arith.constant 0 : index
      %c0_10 = arith.constant 0 : index
      %26 = vector.load %arg7[%c0_9, %c0_10] : memref<8x128xf32, #tpu.memory_space<vmem>>, vector<8x128xf32>
      %c0_11 = arith.constant 0 : index
      %c0_12 = arith.constant 0 : index
      %27 = vector.load %arg5[%c0_11, %c0_12] : memref<128x128xf32, #tpu.memory_space<vmem>>, vector<128x128xf32>
      %cst_13 = arith.constant dense<0.000000e+00> : vector<8x128xf32>
      %28 = tpu.matmul %20, %27, %cst_13 {dimension_numbers = #tpu.dot_dimension_numbers<[1], [0], [0], [1], [0, 0, 1, 1], [], []>, precision = #tpu.contract_precision<fp32>} : vector<8x128xf32>, vector<128x128xf32>, vector<8x128xf32> -> vector<8x128xf32>
      %29 = arith.addf %26, %28 : vector<8x128xf32>
      %c0_14 = arith.constant 0 : index
      %c0_15 = arith.constant 0 : index
      %30 = vector.load %arg7[%c0_14, %c0_15] : memref<8x128xf32, #tpu.memory_space<vmem>>, vector<8x128xf32>
      tpu.vector_store %arg7[%c0_14, %c0_15], %29 {strides = array<i32>} : memref<8x128xf32, #tpu.memory_space<vmem>>, vector<8x128xf32>,
    } else {
    }
    %c0_i32_2 = arith.constant 0 : i32
    %8 = arith.cmpi eq, %arg1, %c0_i32_2 : i32
    %9 = arith.extui %8 : i1 to i32
    %c0_i32_3 = arith.constant 0 : i32
    %10 = arith.cmpi ne, %9, %c0_i32_3 : i32
    scf.if %10 {
      %c0 = arith.constant 0 : index
      %c0_4 = arith.constant 0 : index
      %11 = vector.load %arg7[%c0, %c0_4] : memref<8x128xf32, #tpu.memory_space<vmem>>, vector<8x128xf32>
      %c0_5 = arith.constant 0 : index
      %c0_6 = arith.constant 0 : index
      %12 = vector.load %arg8[%c0_5, %c0_6] : memref<8x1xf32, #tpu.memory_space<vmem>>, vector<8x1xf32>
      %cst = arith.constant 1.000000e+00 : f32
      %13 = vector.broadcast %cst : f32 to vector<8x1xf32>
      %14 = arith.maximumf %12, %13 : vector<8x1xf32>
      %15 = vector.broadcast %14 : vector<8x1xf32> to vector<8x128xf32>
      %16 = arith.divf %11, %15 : vector<8x128xf32>
      %c0_7 = arith.constant 0 : index
      %c0_8 = arith.constant 0 : index
      %17 = vector.load %arg6[%c0_7, %c0_8] : memref<8x128xf32, #tpu.memory_space<vmem>>, vector<8x128xf32>
      %18 = arith.addf %16, %17 : vector<8x128xf32>
      %cst_9 = arith.constant 5.000000e-01 : f32
      %19 = vector.broadcast %cst_9 : f32 to vector<8x128xf32>
      %20 = arith.mulf %18, %19 : vector<8x128xf32>
      %c0_10 = arith.constant 0 : index
      %c0_11 = arith.constant 0 : index
      %21 = vector.load %arg7[%c0_10, %c0_11] : memref<8x128xf32, #tpu.memory_space<vmem>>, vector<8x128xf32>
      tpu.vector_store %arg7[%c0_10, %c0_11], %20 {strides = array<i32>} : memref<8x128xf32, #tpu.memory_space<vmem>>, vector<8x128xf32>,
    } else {
    }
    return
  }
  func.func @transform_0(%arg0: i32, %arg1: i32, %arg2: memref<2xi32, #tpu.memory_space<smem>>, %arg3: memref<2xi32, #tpu.memory_space<smem>>) -> (i32, i32) {
    %0 = arith.index_cast %arg0 : i32 to index
    %1 = memref.load %arg2[%0] : memref<2xi32, #tpu.memory_space<smem>>
    %2 = arith.index_cast %arg0 : i32 to index
    %3 = memref.load %arg3[%2] : memref<2xi32, #tpu.memory_space<smem>>
    %c1_i32 = arith.constant 1 : i32
    %4 = arith.subi %3, %c1_i32 : i32
    %c0_i32 = arith.constant 0 : i32
    %5 = arith.maxsi %4, %c0_i32 : i32
    %6 = arith.minsi %arg1, %5 : i32
    %7 = arith.addi %1, %6 : i32
    %c0_i32_0 = arith.constant 0 : i32
    %c0_i32_1 = arith.constant 0 : i32
    return %c0_i32_0, %7 : i32, i32
  }
  func.func @transform_1(%arg0: i32, %arg1: i32, %arg2: memref<2xi32, #tpu.memory_space<smem>>, %arg3: memref<2xi32, #tpu.memory_space<smem>>) -> (i32, i32) {
    %0 = arith.index_cast %arg0 : i32 to index
    %1 = memref.load %arg2[%0] : memref<2xi32, #tpu.memory_space<smem>>
    %2 = arith.index_cast %arg0 : i32 to index
    %3 = memref.load %arg3[%2] : memref<2xi32, #tpu.memory_space<smem>>
    %c1_i32 = arith.constant 1 : i32
    %4 = arith.subi %3, %c1_i32 : i32
    %c0_i32 = arith.constant 0 : i32
    %5 = arith.maxsi %4, %c0_i32 : i32
    %6 = arith.minsi %arg1, %5 : i32
    %7 = arith.addi %1, %6 : i32
    %c0_i32_0 = arith.constant 0 : i32
    %c0_i32_1 = arith.constant 0 : i32
    return %7, %c0_i32_0 : i32, i32
  }
  func.func @transform_2(%arg0: i32, %arg1: i32, %arg2: memref<2xi32, #tpu.memory_space<smem>>, %arg3: memref<2xi32, #tpu.memory_space<smem>>) -> (i32, i32) {
    %c0_i32 = arith.constant 0 : i32
    %c0_i32_0 = arith.constant 0 : i32
    return %arg0, %c0_i32 : i32, i32
  }
  func.func @transform_3(%arg0: i32, %arg1: i32, %arg2: memref<2xi32, #tpu.memory_space<smem>>, %arg3: memref<2xi32, #tpu.memory_space<smem>>) -> (i32, i32) {
    %c0_i32 = arith.constant 0 : i32
    %c0_i32_0 = arith.constant 0 : i32
    return %arg0, %c0_i32 : i32, i32
  }
}

</mosaic_0001>

<llo_original>
// kernel: tpu_custom_call.1
$region0: #{tpu_custom_call.1}
  #allocation0 [shape = 'u32[]', space=smem, size = 0x4, offset = 0x4, fixed_abs, tag = 'smem constant byte address 0x4 - core index']
  #allocation1 [shape = 'u32[144,128]{1,0:T(1,128)}', space=vmem, size = 0x12000, scoped, tag = 'internal scratch']
  #allocation2 [shape = 'f32[8,1]{1,0:T(8,128)}', space=vmem, size = 0x1000, scoped, tag = 'scratch operand']
  #allocation3 [shape = 's32[1]{0}', space=sflag, size = 0x4, scoped, tag = 'scoped memory for tpu_custom_call.1']
  #allocation4 [shape = 'u8[512]{0}', space=smem, size = 0x200, scoped, tag = 'prefetched SMEM operand 0']
  #allocation5 [shape = 'u8[512]{0}', space=smem, size = 0x200, scoped, tag = 'prefetched SMEM operand 1']
  %s0 = inlined_call_operand.hbm [shape: s32[2], index: 0, kind: input, shape index: {}]
  %s1 = inlined_call_operand.vmem [shape: s32[2], index: 1, kind: input, shape index: {}]
  %s2 = inlined_call_operand.vmem [shape: s32[1,128], index: 2, kind: input, shape index: {}]
  %s3 = inlined_call_operand.hbm [shape: f32[128,128], index: 3, kind: input, shape index: {}]
  %s4 = inlined_call_operand.hbm [shape: f32[16,128], index: 4, kind: input, shape index: {}]
  %s5 = inlined_call_operand.hbm [shape: f32[16,128], index: 5, kind: output, shape index: {}]
  %s6 = sld [smem:[#allocation0]]
  $region65: #{tpu_custom_call.1} parent=0
    _
  %s8 = ssub.s32 1, %s6
  %s9 = scalar_select 0, %s8, %s6
  %11 = dma.hbm_to_smem %s0, 16, [#allocation4], [#allocation3]
  %s12 = sshll.u32 %s1, 4
  %s13 = int_to_ptr.vmem [resolvable:$true] %s12
  %15 = dma.vmem_to_smem %s13, 16, [#allocation5], [#allocation3]
  %16 = dma.done [#allocation3], 32
  %17 = sfence
  $region1: #{tpu_custom_call.1} parent=0
    #allocation6 [shape = 'u8[131072]{0}', space=vmem, size = 0x20000, scoped, tag = 'input window, operand 3']
    #allocation7 [shape = 's32[2]{0}', space=sflag, size = 0x8, scoped, tag = 'scoped memory for tpu_custom_call.1']
    #allocation8 [shape = 's32[2]{0}', space=sflag, size = 0x8, scoped, tag = 'scoped memory for tpu_custom_call.1']
    #allocation9 [shape = 'u8[8192]{0}', space=vmem, size = 0x2000, scoped, tag = 'input window, operand 4']
    #allocation10 [shape = 's32[2]{0}', space=sflag, size = 0x8, scoped, tag = 'scoped memory for tpu_custom_call.1']
    #allocation11 [shape = 'u8[8192]{0}', space=vmem, size = 0x2000, scoped, tag = 'output window, operand 0']
    %18 = vsyncpa [#allocation7], 0
    %s19 = scalar_lea.sflag [#allocation7], 1
    %20 = vsyncpa %s19, 0
    %21 = vsyncpa [#allocation10], 0
    %s22 = scalar_lea.sflag [#allocation10], 1
    %23 = vsyncpa %s22, 0
    %24 = vsyncpa [#allocation8], 0
    %s25 = scalar_lea.sflag [#allocation8], 1
    %26 = vsyncpa %s25, 0
    loop: start=0, step=1, limit=4
    $region2: #{tpu_custom_call.1} parent=1 // loop_pre_header
      _
    $region3: #{tpu_custom_call.1} parent=1 // loop_header
      %s28 = sphi 0, %s32
      %p29 = scmp.ge.s32.totalorder %s28, 4
      %s35 = sphi 0, %s47
      %s36 = sphi 0, %s43
      %s37 = sphi 0, %s35
      %s38 = sphi 0, %s36
      %s39 = sphi 0, %s37
      %s40 = sphi 0, %s38
      %s66 = sphi 0, %s68
      %s69 = sphi 0, %s66
      %s70 = sphi 0, %s69
      %s86 = sphi 0, %s70
      %s108 = sphi 0, %s110
      %s111 = sphi 0, %s108
      %s112 = sphi 0, %s111
      %s128 = sphi 0, %s112
      %s134 = sphi 0, %s136
      %s137 = sphi 0, %s134
      %s138 = sphi 0, %s137
      %s154 = sphi 0, %s138
      %s160 = sphi 0, %s162
      %s163 = sphi 0, %s160
      %s164 = sphi 0, %s163
      %s180 = sphi 0, %s164
    $region4: #{tpu_custom_call.1} parent=1 // loop_header_branch
      %31 = sbr.rel (%p29) target = $region8
    $region5: #{tpu_custom_call.1} parent=1 // loop_body
      %s33 = ssub.s32 %s28, 1
      %s34 = ssub.s32 %s28, 2
      %s41 = sadd.s32 1, %s36
      %p42 = scmp.ge.s32.totalorder %s41, 1
      %s43 = scalar_select %p42, 0, %s41
      %s44 = sadd.s32 1, %s35
      %s45 = scalar_select %p42, %s44, %s35
      %p46 = scmp.ge.s32.totalorder %s45, 2
      %s47 = scalar_select %p46, 0, %s45
      %s48 = sld [smem:[#allocation4 + %s35]]
      %s49 = sld [smem:[#allocation5 + %s35]]
      %s50 = ssub.s32 %s49, 1
      %p51 = scmp.gt.s32.totalorder %s50, 0
      %s52 = scalar_select %p51, %s50, 0
      %p53 = scmp.lt.s32.totalorder %s36, %s52
      %s54 = scalar_select %p53, %s36, %s52
      %s55 = sadd.s32 %s48, %s54
      %s56 = sld [smem:[#allocation4 + %s47]]
      %s57 = sld [smem:[#allocation5 + %s47]]
      %s58 = ssub.s32 %s57, 1
      %p59 = scmp.gt.s32.totalorder %s58, 0
      %s60 = scalar_select %p59, %s58, 0
      %p61 = scmp.lt.s32.totalorder %s43, %s60
      %s62 = scalar_select %p61, %s43, %s60
      %s63 = sadd.s32 %s56, %s62
      %s64 = ssub.s32 %s55, %s63
      %p65 = scmp.eq.s32.totalorder %s64, 0
      %s67 = sadd.s32 %s66, 1
      %s68 = scalar_select %p65, %s66, %s67
      %p71 = pneg %p65
      %p72 = scmp.eq.s32.totalorder %s28, 1
      %p73 = por %p71, %p72
      %p74 = scmp.ne.s32.totalorder %s66, %s69
      %p75 = scmp.eq.s32.totalorder %s28, 0
      %p76 = por %p74, %p75
      %p77 = scmp.ne.s32.totalorder %s66, %s69
      %p78 = scmp.eq.s32.totalorder %s33, 1
      %p79 = por %p77, %p78
      %p80 = scmp.ne.s32.totalorder %s69, %s70
      %p81 = scmp.eq.s32.totalorder %s33, 0
      %p82 = por %p80, %p81
      %p83 = scmp.ne.s32.totalorder %s69, %s70
      %p84 = scmp.eq.s32.totalorder %s34, 1
      %p85 = por %p83, %p84
      %p87 = scmp.ne.s32.totalorder %s70, %s86
      %p88 = scmp.eq.s32.totalorder %s34, 0
      %p89 = por %p87, %p88
      %s90 = sld [smem:[#allocation4 + %s35]]
      %s91 = sld [smem:[#allocation5 + %s35]]
      %s92 = ssub.s32 %s91, 1
      %p93 = scmp.gt.s32.totalorder %s92, 0
      %s94 = scalar_select %p93, %s92, 0
      %p95 = scmp.lt.s32.totalorder %s36, %s94
      %s96 = scalar_select %p95, %s36, %s94
      %s97 = sadd.s32 %s90, %s96
      %s98 = sld [smem:[#allocation4 + %s47]]
      %s99 = sld [smem:[#allocation5 + %s47]]
      %s100 = ssub.s32 %s99, 1
      %p101 = scmp.gt.s32.totalorder %s100, 0
      %s102 = scalar_select %p101, %s100, 0
      %p103 = scmp.lt.s32.totalorder %s43, %s102
      %s104 = scalar_select %p103, %s43, %s102
      %s105 = sadd.s32 %s98, %s104
      %s106 = ssub.s32 %s97, %s105
      %p107 = scmp.eq.s32.totalorder %s106, 0
      %s109 = sadd.s32 %s108, 1
      %s110 = scalar_select %p107, %s108, %s109
      %p113 = pneg %p107
      %p114 = scmp.eq.s32.totalorder %s28, 1
      %p115 = por %p113, %p114
      %p116 = scmp.ne.s32.totalorder %s108, %s111
      %p117 = scmp.eq.s32.totalorder %s28, 0
      %p118 = por %p116, %p117
      %p119 = scmp.ne.s32.totalorder %s108, %s111
      %p120 = scmp.eq.s32.totalorder %s33, 1
      %p121 = por %p119, %p120
      %p122 = scmp.ne.s32.totalorder %s111, %s112
      %p123 = scmp.eq.s32.totalorder %s33, 0
      %p124 = por %p122, %p123
      %p125 = scmp.ne.s32.totalorder %s111, %s112
      %p126 = scmp.eq.s32.totalorder %s34, 1
      %p127 = por %p125, %p126
      %p129 = scmp.ne.s32.totalorder %s112, %s128
      %p130 = scmp.eq.s32.totalorder %s34, 0
      %p131 = por %p129, %p130
      %s132 = ssub.s32 %s35, %s47
      %p133 = scmp.eq.s32.totalorder %s132, 0
      %s135 = sadd.s32 %s134, 1
      %s136 = scalar_select %p133, %s134, %s135
      %p139 = pneg %p133
      %p140 = scmp.eq.s32.totalorder %s28, 1
      %p141 = por %p139, %p140
      %p142 = scmp.ne.s32.totalorder %s134, %s137
      %p143 = scmp.eq.s32.totalorder %s28, 0
      %p144 = por %p142, %p143
      %p145 = scmp.ne.s32.totalorder %s134, %s137
      %p146 = scmp.eq.s32.totalorder %s33, 1
      %p147 = por %p145, %p146
      %p148 = scmp.ne.s32.totalorder %s137, %s138
      %p149 = scmp.eq.s32.totalorder %s33, 0
      %p150 = por %p148, %p149
      %p151 = scmp.ne.s32.totalorder %s137, %s138
      %p152 = scmp.eq.s32.totalorder %s34, 1
      %p153 = por %p151, %p152
      %p155 = scmp.ne.s32.totalorder %s138, %s154
      %p156 = scmp.eq.s32.totalorder %s34, 0
      %p157 = por %p155, %p156
      %s158 = ssub.s32 %s35, %s47
      %p159 = scmp.eq.s32.totalorder %s158, 0
      %s161 = sadd.s32 %s160, 1
      %s162 = scalar_select %p159, %s160, %s161
      %p165 = pneg %p159
      %p166 = scmp.eq.s32.totalorder %s28, 1
      %p167 = por %p165, %p166
      %p168 = scmp.ne.s32.totalorder %s160, %s163
      %p169 = scmp.eq.s32.totalorder %s28, 0
      %p170 = por %p168, %p169
      %p171 = scmp.ne.s32.totalorder %s160, %s163
      %p172 = scmp.eq.s32.totalorder %s33, 1
      %p173 = por %p171, %p172
      %p174 = scmp.ne.s32.totalorder %s163, %s164
      %p175 = scmp.eq.s32.totalorder %s33, 0
      %p176 = por %p174, %p175
      %p177 = scmp.ne.s32.totalorder %s163, %s164
      %p178 = scmp.eq.s32.totalorder %s34, 1
      %p179 = por %p177, %p178
      %p181 = scmp.ne.s32.totalorder %s164, %s180
      %p182 = scmp.eq.s32.totalorder %s34, 0
      %p183 = por %p181, %p182
      %p184 = scmp.le.s32.totalorder 1, %s28
      %p185 = scmp.lt.s32.totalorder %s28, 3
      %p186 = pnand %p184, %p185
      %p187 = pneg %p186
      // Predicated region
      $region9: #{tpu_custom_call.1} parent=5 // pred_check
        _
      $region10: #{tpu_custom_call.1} parent=5 // pred_check_branch
        %189 = sbr.rel (%p186) target = $region12
      $region11: #{tpu_custom_call.1} parent=5 // pred_region
        %s190 = ssub.s32 %s28, 1
      $region12: #{tpu_custom_call.1} parent=5 // pred_fallthru
        _
      %p191 = scmp.lt.s32.totalorder %s28, 2
      // Predicated region
      $region13: #{tpu_custom_call.1} parent=5 // pred_check
        %p192 = pneg %p191
      $region14: #{tpu_custom_call.1} parent=5 // pred_check_branch
        %194 = sbr.rel (%p192) target = $region16
      $region15: #{tpu_custom_call.1} parent=5 // pred_region
        // Predicated region
        $region17: #{tpu_custom_call.1} parent=15 // pred_check
          %p195 = pneg %p76
        $region18: #{tpu_custom_call.1} parent=15 // pred_check_branch
          %197 = sbr.rel (%p195) target = $region20
        $region19: #{tpu_custom_call.1} parent=15 // pred_region
          %s198 = sld [smem:[#allocation4 + %s35]]
          %s199 = sld [smem:[#allocation5 + %s35]]
          %s200 = ssub.s32 %s199, 1
          %p201 = scmp.gt.s32.totalorder %s200, 0
          %s202 = scalar_select %p201, %s200, 0
          %p203 = scmp.lt.s32.totalorder %s36, %s202
          %s204 = scalar_select %p203, %s36, %s202
          %s205 = sadd.s32 %s198, %s204
          %p206 = scmp.lt.s32.totalorder %s205, 0
          %s207 = scalar_select %p206, %s205, 0
          %s208 = scalar_lea.vmem %s2, %s207
          %s209 = sld [smem:[#allocation4 + %s35]]
          %s210 = sld [smem:[#allocation5 + %s35]]
          %s211 = ssub.s32 %s210, 1
          %p212 = scmp.gt.s32.totalorder %s211, 0
          %s213 = scalar_select %p212, %s211, 0
          %p214 = scmp.lt.s32.totalorder %s36, %s213
          %s215 = scalar_select %p214, %s36, %s213
          %s216 = sadd.s32 %s209, %s215
        $region20: #{tpu_custom_call.1} parent=15 // pred_fallthru
          _
        // Predicated region
        $region21: #{tpu_custom_call.1} parent=15 // pred_check
          %p217 = pneg %p118
        $region22: #{tpu_custom_call.1} parent=15 // pred_check_branch
          %219 = sbr.rel (%p217) target = $region24
        $region23: #{tpu_custom_call.1} parent=15 // pred_region
          %s220 = sand.u32 %s108, 1
          %s221 = scalar_lea.sflag [#allocation7], %s220
          %s222 = sand.u32 %s108, 1
          %s223 = smul.addr %s222, 128
          %s224 = scalar_lea.vmem [#allocation6], %s223
          %s225 = sld [smem:[#allocation4 + %s35]]
          %s226 = sld [smem:[#allocation5 + %s35]]
          %s227 = ssub.s32 %s226, 1
          %p228 = scmp.gt.s32.totalorder %s227, 0
          %s229 = scalar_select %p228, %s227, 0
          %p230 = scmp.lt.s32.totalorder %s36, %s229
          %s231 = scalar_select %p230, %s36, %s229
          %s232 = sadd.s32 %s225, %s231
          %s233 = smul.u32 16, %s232
          %s235 = ssub.s32 2048, 2048
          %236 = vsyncadd %s221, %s235
          %s237 = smul.addr %s233, 128
          %s238 = scalar_lea.hbm %s3, %s237
          %s239 = sshll.u32 %s224, 4
          %s240 = int_to_ptr.vmem [resolvable:$true] %s239
          %245 = dma.hbm_to_vmem [thread:$0]  %s238, 2048, %s240, %s221, 128, 128, 8
        $region24: #{tpu_custom_call.1} parent=15 // pred_fallthru
          _
        // Predicated region
        $region25: #{tpu_custom_call.1} parent=15 // pred_check
          %p246 = pneg %p144
        $region26: #{tpu_custom_call.1} parent=15 // pred_check_branch
          %248 = sbr.rel (%p246) target = $region28
        $region27: #{tpu_custom_call.1} parent=15 // pred_region
          %s249 = sand.u32 %s134, 1
          %s250 = scalar_lea.sflag [#allocation10], %s249
          %s251 = sand.u32 %s134, 1
          %s252 = smul.addr %s251, 8
          %s253 = scalar_lea.vmem [#allocation9], %s252
          %s255 = ssub.s32 128, 128
          %256 = vsyncadd %s250, %s255
          %s257 = smul.addr %s35, 128
          %s258 = scalar_lea.hbm %s4, %s257
          %s260 = sshll.u32 %s253, 4
          %s261 = int_to_ptr.vmem [resolvable:$true] %s260
          %263 = dma.hbm_to_vmem [thread:$0]  %s258, 128, %s261, %s250
        $region28: #{tpu_custom_call.1} parent=15 // pred_fallthru
          _
      $region16: #{tpu_custom_call.1} parent=5 // pred_fallthru
        _
      %p264 = scmp.le.s32.totalorder 1, %s28
      %p265 = scmp.lt.s32.totalorder %s28, 3
      %p266 = pnand %p264, %p265
      %p267 = pneg %p266
      // Predicated region
      $region29: #{tpu_custom_call.1} parent=5 // pred_check
        _
      $region30: #{tpu_custom_call.1} parent=5 // pred_check_branch
        %269 = sbr.rel (%p266) target = $region32
      $region31: #{tpu_custom_call.1} parent=5 // pred_region
        %s270 = ssub.s32 %s28, 1
        %s271 = sand.u32 %s111, 1
        %s272 = scalar_lea.sflag [#allocation7], %s271
        %s273 = sand.u32 %s111, 1
        %s274 = smul.addr %s273, 128
        %s275 = scalar_lea.vmem [#allocation6], %s274
        // Predicated region
        $region33: #{tpu_custom_call.1} parent=31 // pred_check
          %p276 = pneg %p124
        $region34: #{tpu_custom_call.1} parent=31 // pred_check_branch
          %278 = sbr.rel (%p276) target = $region36
        $region35: #{tpu_custom_call.1} parent=31 // pred_region
          %279 = dma.done %s272, 2048
        $region36: #{tpu_custom_call.1} parent=31 // pred_fallthru
          _
        %s280 = sand.u32 %s137, 1
        %s281 = scalar_lea.sflag [#allocation10], %s280
        %s282 = sand.u32 %s137, 1
        %s283 = smul.addr %s282, 8
        %s284 = scalar_lea.vmem [#allocation9], %s283
        // Predicated region
        $region37: #{tpu_custom_call.1} parent=31 // pred_check
          %p285 = pneg %p150
        $region38: #{tpu_custom_call.1} parent=31 // pred_check_branch
          %287 = sbr.rel (%p285) target = $region40
        $region39: #{tpu_custom_call.1} parent=31 // pred_region
          %288 = dma.done %s281, 128
        $region40: #{tpu_custom_call.1} parent=31 // pred_fallthru
          _
        %s289 = sld [smem:[#allocation4 + %s37]]
        %s290 = sld [smem:[#allocation5 + %s37]]
        %s291 = ssub.s32 %s290, 1
        %p292 = scmp.gt.s32.totalorder %s291, 0
        %s293 = scalar_select %p292, %s291, 0
        %p294 = scmp.lt.s32.totalorder %s38, %s293
        %s295 = scalar_select %p294, %s38, %s293
        %s296 = sadd.s32 %s289, %s295
        %p297 = scmp.lt.s32.totalorder %s296, 0
        %s298 = scalar_select %p297, %s296, 0
        %s299 = scalar_lea.vmem %s2, %s298
        %p300 = pneg %p82
        %p301 = pneg %p79
        %s302 = sand.u32 %s111, 1
        %s303 = scalar_lea.sflag [#allocation7], %s302
        %s304 = sand.u32 %s111, 1
        %s305 = smul.addr %s304, 128
        %s306 = scalar_lea.vmem [#allocation6], %s305
        %p307 = pneg %p124
        %p308 = pneg %p121
        %s309 = sand.u32 %s137, 1
        %s310 = scalar_lea.sflag [#allocation10], %s309
        %s311 = sand.u32 %s137, 1
        %s312 = smul.addr %s311, 8
        %s313 = scalar_lea.vmem [#allocation9], %s312
        %p314 = pneg %p150
        %p315 = pneg %p147
        %p316 = pneg %p176
        %p317 = pneg %p173
        %s318 = sand.u32 %s163, 1
        %s319 = scalar_lea.sflag [#allocation8], %s318
        %s320 = sand.u32 %s163, 1
        %s321 = smul.addr %s320, 8
        %s322 = scalar_lea.vmem [#allocation11], %s321
        %s323 = sld [smem:[#allocation4 + %s37]]
        %s324 = sld [smem:[#allocation5 + %s37]]
        %s325 = ssub.s32 %s324, 1
        %p326 = scmp.gt.s32.totalorder %s325, 0
        %s327 = scalar_select %p326, %s325, 0
        %p328 = scmp.lt.s32.totalorder %s38, %s327
        %s329 = scalar_select %p328, %s38, %s327
        %s330 = sadd.s32 %s323, %s329
        %p331 = scmp.lt.s32.totalorder %s330, 0
        %s332 = scalar_select %p331, %s330, 0
        %s333 = scalar_lea.vmem %s2, %s332
        %s334 = sld [smem:[#allocation4 + %s37]]
        %s335 = sld [smem:[#allocation5 + %s37]]
        %s336 = ssub.s32 %s335, 1
        %p337 = scmp.gt.s32.totalorder %s336, 0
        %s338 = scalar_select %p337, %s336, 0
        %p339 = scmp.lt.s32.totalorder %s38, %s338
        %s340 = scalar_select %p339, %s38, %s338
        %s341 = sadd.s32 %s334, %s340
        %s342 = sld [smem:[#allocation4 + %s37]]
        %s343 = sld [smem:[#allocation5 + %s37]]
        %s344 = ssub.s32 %s343, 1
        %p345 = scmp.gt.s32.totalorder %s344, 0
        %s346 = scalar_select %p345, %s344, 0
        %p347 = scmp.lt.s32.totalorder %s38, %s346
        %s348 = scalar_select %p347, %s38, %s346
        %s349 = sadd.s32 %s342, %s348
        %s350 = smul.u32 16, %s349
        %p351 = scmp.eq.s32.totalorder %s38, 0
        // Predicated region
        $region41: #{tpu_custom_call.1} parent=31 // pred_check
          %p352 = pneg %p351
        $region42: #{tpu_custom_call.1} parent=31 // pred_check_branch
          %354 = sbr.rel (%p352) target = $region44
        $region43: #{tpu_custom_call.1} parent=31 // pred_region
          %355 = vst [vmem:[%s322] sm:$0xff] 0.0
          %vm356 = vcmask 7168
          %357 = vst.msk [vmem:[#allocation2] sm:$0xff] %vm356, 0.0
        $region44: #{tpu_custom_call.1} parent=31 // pred_fallthru
          _
        %s358 = sld [smem:[#allocation5 + %s37]]
        %p359 = scmp.lt.s32.totalorder %s38, %s358
        // Predicated region
        $region45: #{tpu_custom_call.1} parent=31 // pred_check
          %p360 = pneg %p359
        $region46: #{tpu_custom_call.1} parent=31 // pred_check_branch
          %362 = sbr.rel (%p360) target = $region48
        $region47: #{tpu_custom_call.1} parent=31 // pred_region
          %v363 = vlaneseq
          %v364 = vshrl.u32 %v363, 7
          %v365 = vld [vmem:[%s333] sm:$0x1]
          %s366 = smul.u32 %s37, 8
          %v367 = vstv %s366
          %v368 = vsub.s32 %v365, %v367
          %v369 = vlaneseq
          %v370 = vshrl.u32 %v369, 7
          %v371 = vsub.s32 0, %v370
          %v372 = vrot.slane %v368, %v371
          %vm373 = vcmp.eq.s32.totalorder %v364, %v372
          %v374 = vsel %vm373, 1, 0
          %v375 = vcvt.s32.f32 %v374
          %v376 = vld [vmem:[#allocation2] sm:$0xff]
          %377 = vadd.xlane.f32.xlu0 %v375
          %v378 = vpop.xlane.xlu0 %377
          %v379 = vadd.f32 %v376, %v378
          %vm380 = vcmask 7168
          %381 = vst.msk [vmem:[#allocation2] sm:$0xff] %vm380, %v379
          %v382 = vld [vmem:[%s322] sm:$0xff]
          %v383 = vld [vmem:[%s275] sm:$0xff]
          %v384 = vld [vmem:[%s275 + $0x8] sm:$0xff]
          %v385 = vld [vmem:[%s275 + $0x10] sm:$0xff]
          %v386 = vld [vmem:[%s275 + $0x18] sm:$0xff]
          %v387 = vld [vmem:[%s275 + $0x20] sm:$0xff]
          %v388 = vld [vmem:[%s275 + $0x28] sm:$0xff]
          %v389 = vld [vmem:[%s275 + $0x30] sm:$0xff]
          %v390 = vld [vmem:[%s275 + $0x38] sm:$0xff]
          %v391 = vld [vmem:[%s275 + $0x40] sm:$0xff]
          %v392 = vld [vmem:[%s275 + $0x48] sm:$0xff]
          %v393 = vld [vmem:[%s275 + $0x50] sm:$0xff]
          %v394 = vld [vmem:[%s275 + $0x58] sm:$0xff]
          %v395 = vld [vmem:[%s275 + $0x60] sm:$0xff]
          %v396 = vld [vmem:[%s275 + $0x68] sm:$0xff]
          %v397 = vld [vmem:[%s275 + $0x70] sm:$0xff]
          %v398 = vld [vmem:[%s275 + $0x78] sm:$0xff]
          %399 = vmatprep.subr.mxu0 0.0
          %v400 = vand.u32 %v383, 4294901760
          %401 = vmatpush1.msra.mxu0 %v400
          %402 = vmatprep.subr.mxu0 0.0
          %v403 = vand.u32 %v384, 4294901760
          %404 = vmatpush1.msra.mxu0 %v403
          %405 = vmatprep.subr.mxu0 0.0
          %v406 = vand.u32 %v385, 4294901760
          %407 = vmatpush1.msra.mxu0 %v406
          %408 = vmatprep.subr.mxu0 0.0
          %v409 = vand.u32 %v386, 4294901760
          %410 = vmatpush1.msra.mxu0 %v409
          %411 = vmatprep.subr.mxu0 0.0
          %v412 = vand.u32 %v387, 4294901760
          %413 = vmatpush1.msra.mxu0 %v412
          %414 = vmatprep.subr.mxu0 0.0
          %v415 = vand.u32 %v388, 4294901760
          %416 = vmatpush1.msra.mxu0 %v415
          %417 = vmatprep.subr.mxu0 0.0
          %v418 = vand.u32 %v389, 4294901760
          %419 = vmatpush1.msra.mxu0 %v418
          %420 = vmatprep.subr.mxu0 0.0
          %v421 = vand.u32 %v390, 4294901760
          %422 = vmatpush1.msra.mxu0 %v421
          %423 = vmatprep.subr.mxu0 0.0
          %v424 = vand.u32 %v391, 4294901760
          %425 = vmatpush1.msra.mxu0 %v424
          %426 = vmatprep.subr.mxu0 0.0
          %v427 = vand.u32 %v392, 4294901760
          %428 = vmatpush1.msra.mxu0 %v427
          %429 = vmatprep.subr.mxu0 0.0
          %v430 = vand.u32 %v393, 4294901760
          %431 = vmatpush1.msra.mxu0 %v430
          %432 = vmatprep.subr.mxu0 0.0
          %v433 = vand.u32 %v394, 4294901760
          %434 = vmatpush1.msra.mxu0 %v433
          %435 = vmatprep.subr.mxu0 0.0
          %v436 = vand.u32 %v395, 4294901760
          %437 = vmatpush1.msra.mxu0 %v436
          %438 = vmatprep.subr.mxu0 0.0
          %v439 = vand.u32 %v396, 4294901760
          %440 = vmatpush1.msra.mxu0 %v439
          %441 = vmatprep.subr.mxu0 0.0
          %v442 = vand.u32 %v397, 4294901760
          %443 = vmatpush1.msra.mxu0 %v442
          %444 = vmatprep.subr.mxu0 0.0
          %v445 = vand.u32 %v398, 4294901760
          %446 = vmatpush1.msra.mxu0 %v445
          %447 = vmatprep.subr.mxu0 0.0
          %448 = vmatpush1.msra.mxu0 0.0
          %449 = vmatprep.subr.mxu0 0.0
          %450 = vmatpush1.msra.mxu0 0.0
          %451 = vmatprep.subr.mxu0 0.0
          %452 = vmatpush1.msra.mxu0 0.0
          %453 = vmatprep.subr.mxu0 0.0
          %454 = vmatpush1.msra.mxu0 0.0
          %455 = vmatprep.subr.mxu0 0.0
          %456 = vmatpush1.msra.mxu0 0.0
          %457 = vmatprep.subr.mxu0 0.0
          %458 = vmatpush1.msra.mxu0 0.0
          %459 = vmatprep.subr.mxu0 0.0
          %460 = vmatpush1.msra.mxu0 0.0
          %461 = vmatprep.subr.mxu0 0.0
          %462 = vmatpush1.msra.mxu0 0.0
          %463 = vmatprep.subr.mxu0 0.0
          %464 = vmatpush1.msra.mxu0 0.0
          %465 = vmatprep.subr.mxu0 0.0
          %466 = vmatpush1.msra.mxu0 0.0
          %467 = vmatprep.subr.mxu0 0.0
          %468 = vmatpush1.msra.mxu0 0.0
          %469 = vmatprep.subr.mxu0 0.0
          %470 = vmatpush1.msra.mxu0 0.0
          %471 = vmatprep.subr.mxu0 0.0
          %472 = vmatpush1.msra.mxu0 0.0
          %473 = vmatprep.subr.mxu0 0.0
          %474 = vmatpush1.msra.mxu0 0.0
          %475 = vmatprep.subr.mxu0 0.0
          %476 = vmatpush1.msra.mxu0 0.0
          %477 = vmatprep.subr.mxu0 0.0
          %478 = vmatpush1.msra.mxu0 0.0
          %479 = vmatprep.mubr.f32.mxu0 0.0
          %v480 = vand.u32 %v375, 4294901760
          %v481 = vsub.f32 %v375, %v480
          %v482 = vand.u32 %v481, 4294901760
          %v483 = vsub.f32 %v481, %v482
          %v484 = vand.u32 %v483, 4294901760
          %485 = vmatmul.mubr.f32.gmra.mrb[0].mxu0 %v484
          %v486 = vpop.f32.mrb[0].mxu0
          %v487 = vadd.f32 0.0, %v486
          %v488 = vpop.f32.mrb[0].mxu0
          %489 = vdwg.mxu0
          %490 = vmatprep.subr.mxu0 0.0
          %v491 = vand.u32 %v383, 4294901760
          %v492 = vsub.f32 %v383, %v491
          %v493 = vand.u32 %v492, 4294901760
          %v494 = vsub.f32 %v492, %v493
          %v495 = vand.u32 %v494, 4294901760
          %496 = vmatpush1.msra.mxu0 %v495
          %497 = vmatprep.subr.mxu0 0.0
          %v498 = vand.u32 %v384, 4294901760
          %v499 = vsub.f32 %v384, %v498
          %v500 = vand.u32 %v499, 4294901760
          %v501 = vsub.f32 %v499, %v500
          %v502 = vand.u32 %v501, 4294901760
          %503 = vmatpush1.msra.mxu0 %v502
          %504 = vmatprep.subr.mxu0 0.0
          %v505 = vand.u32 %v385, 4294901760
          %v506 = vsub.f32 %v385, %v505
          %v507 = vand.u32 %v506, 4294901760
          %v508 = vsub.f32 %v506, %v507
          %v509 = vand.u32 %v508, 4294901760
          %510 = vmatpush1.msra.mxu0 %v509
          %511 = vmatprep.subr.mxu0 0.0
          %v512 = vand.u32 %v386, 4294901760
          %v513 = vsub.f32 %v386, %v512
          %v514 = vand.u32 %v513, 4294901760
          %v515 = vsub.f32 %v513, %v514
          %v516 = vand.u32 %v515, 4294901760
          %517 = vmatpush1.msra.mxu0 %v516
          %518 = vmatprep.subr.mxu0 0.0
          %v519 = vand.u32 %v387, 4294901760
          %v520 = vsub.f32 %v387, %v519
          %v521 = vand.u32 %v520, 4294901760
          %v522 = vsub.f32 %v520, %v521
          %v523 = vand.u32 %v522, 4294901760
          %524 = vmatpush1.msra.mxu0 %v523
          %525 = vmatprep.subr.mxu0 0.0
          %v526 = vand.u32 %v388, 4294901760
          %v527 = vsub.f32 %v388, %v526
          %v528 = vand.u32 %v527, 4294901760
          %v529 = vsub.f32 %v527, %v528
          %v530 = vand.u32 %v529, 4294901760
          %531 = vmatpush1.msra.mxu0 %v530
          %532 = vmatprep.subr.mxu0 0.0
          %v533 = vand.u32 %v389, 4294901760
          %v534 = vsub.f32 %v389, %v533
          %v535 = vand.u32 %v534, 4294901760
          %v536 = vsub.f32 %v534, %v535
          %v537 = vand.u32 %v536, 4294901760
          %538 = vmatpush1.msra.mxu0 %v537
          %539 = vmatprep.subr.mxu0 0.0
          %v540 = vand.u32 %v390, 4294901760
          %v541 = vsub.f32 %v390, %v540
          %v542 = vand.u32 %v541, 4294901760
          %v543 = vsub.f32 %v541, %v542
          %v544 = vand.u32 %v543, 4294901760
          %545 = vmatpush1.msra.mxu0 %v544
          %546 = vmatprep.subr.mxu0 0.0
          %v547 = vand.u32 %v391, 4294901760
          %v548 = vsub.f32 %v391, %v547
          %v549 = vand.u32 %v548, 4294901760
          %v550 = vsub.f32 %v548, %v549
          %v551 = vand.u32 %v550, 4294901760
          %552 = vmatpush1.msra.mxu0 %v551
          %553 = vmatprep.subr.mxu0 0.0
          %v554 = vand.u32 %v392, 4294901760
          %v555 = vsub.f32 %v392, %v554
          %v556 = vand.u32 %v555, 4294901760
          %v557 = vsub.f32 %v555, %v556
          %v558 = vand.u32 %v557, 4294901760
          %559 = vmatpush1.msra.mxu0 %v558
          %560 = vmatprep.subr.mxu0 0.0
          %v561 = vand.u32 %v393, 4294901760
          %v562 = vsub.f32 %v393, %v561
          %v563 = vand.u32 %v562, 4294901760
          %v564 = vsub.f32 %v562, %v563
          %v565 = vand.u32 %v564, 4294901760
          %566 = vmatpush1.msra.mxu0 %v565
          %567 = vmatprep.subr.mxu0 0.0
          %v568 = vand.u32 %v394, 4294901760
          %v569 = vsub.f32 %v394, %v568
          %v570 = vand.u32 %v569, 4294901760
          %v571 = vsub.f32 %v569, %v570
          %v572 = vand.u32 %v571, 4294901760
          %573 = vmatpush1.msra.mxu0 %v572
          %574 = vmatprep.subr.mxu0 0.0
          %v575 = vand.u32 %v395, 4294901760
          %v576 = vsub.f32 %v395, %v575
          %v577 = vand.u32 %v576, 4294901760
          %v578 = vsub.f32 %v576, %v577
          %v579 = vand.u32 %v578, 4294901760
          %580 = vmatpush1.msra.mxu0 %v579
          %581 = vmatprep.subr.mxu0 0.0
          %v582 = vand.u32 %v396, 4294901760
          %v583 = vsub.f32 %v396, %v582
          %v584 = vand.u32 %v583, 4294901760
          %v585 = vsub.f32 %v583, %v584
          %v586 = vand.u32 %v585, 4294901760
          %587 = vmatpush1.msra.mxu0 %v586
          %588 = vmatprep.subr.mxu0 0.0
          %v589 = vand.u32 %v397, 4294901760
          %v590 = vsub.f32 %v397, %v589
          %v591 = vand.u32 %v590, 4294901760
          %v592 = vsub.f32 %v590, %v591
          %v593 = vand.u32 %v592, 4294901760
          %594 = vmatpush1.msra.mxu0 %v593
          %595 = vmatprep.subr.mxu0 0.0
          %v596 = vand.u32 %v398, 4294901760
          %v597 = vsub.f32 %v398, %v596
          %v598 = vand.u32 %v597, 4294901760
          %v599 = vsub.f32 %v597, %v598
          %v600 = vand.u32 %v599, 4294901760
          %601 = vmatpush1.msra.mxu0 %v600
          %602 = vmatprep.subr.mxu0 0.0
          %603 = vmatpush1.msra.mxu0 0.0
          %604 = vmatprep.subr.mxu0 0.0
          %605 = vmatpush1.msra.mxu0 0.0
          %606 = vmatprep.subr.mxu0 0.0
          %607 = vmatpush1.msra.mxu0 0.0
          %608 = vmatprep.subr.mxu0 0.0
          %609 = vmatpush1.msra.mxu0 0.0
          %610 = vmatprep.subr.mxu0 0.0
          %611 = vmatpush1.msra.mxu0 0.0
          %612 = vmatprep.subr.mxu0 0.0
          %613 = vmatpush1.msra.mxu0 0.0
          %614 = vmatprep.subr.mxu0 0.0
          %615 = vmatpush1.msra.mxu0 0.0
          %616 = vmatprep.subr.mxu0 0.0
          %617 = vmatpush1.msra.mxu0 0.0
          %618 = vmatprep.subr.mxu0 0.0
          %619 = vmatpush1.msra.mxu0 0.0
          %620 = vmatprep.subr.mxu0 0.0
          %621 = vmatpush1.msra.mxu0 0.0
          %622 = vmatprep.subr.mxu0 0.0
          %623 = vmatpush1.msra.mxu0 0.0
          %624 = vmatprep.subr.mxu0 0.0
          %625 = vmatpush1.msra.mxu0 0.0
          %626 = vmatprep.subr.mxu0 0.0
          %627 = vmatpush1.msra.mxu0 0.0
          %628 = vmatprep.subr.mxu0 0.0
          %629 = vmatpush1.msra.mxu0 0.0
          %630 = vmatprep.subr.mxu0 0.0
          %631 = vmatpush1.msra.mxu0 0.0
          %632 = vmatprep.subr.mxu0 0.0
          %633 = vmatpush1.msra.mxu0 0.0
          %634 = vmatprep.mubr.f32.mxu0 0.0
          %v635 = vand.u32 %v375, 4294901760
          %636 = vmatmul.mubr.f32.gmra.mrb[0].mxu0 %v635
          %v637 = vpop.f32.mrb[0].mxu0
          %v638 = vadd.f32 %v487, %v637
          %v639 = vpop.f32.mrb[0].mxu0
          %640 = vdwg.mxu0
          %641 = vmatprep.subr.mxu0 0.0
          %v642 = vand.u32 %v383, 4294901760
          %v643 = vsub.f32 %v383, %v642
          %644 = vmatpush1.msra.mxu0 %v643
          %645 = vmatprep.subr.mxu0 0.0
          %v646 = vand.u32 %v384, 4294901760
          %v647 = vsub.f32 %v384, %v646
          %648 = vmatpush1.msra.mxu0 %v647
          %649 = vmatprep.subr.mxu0 0.0
          %v650 = vand.u32 %v385, 4294901760
          %v651 = vsub.f32 %v385, %v650
          %652 = vmatpush1.msra.mxu0 %v651
          %653 = vmatprep.subr.mxu0 0.0
          %v654 = vand.u32 %v386, 4294901760
          %v655 = vsub.f32 %v386, %v654
          %656 = vmatpush1.msra.mxu0 %v655
          %657 = vmatprep.subr.mxu0 0.0
          %v658 = vand.u32 %v387, 4294901760
          %v659 = vsub.f32 %v387, %v658
          %660 = vmatpush1.msra.mxu0 %v659
          %661 = vmatprep.subr.mxu0 0.0
          %v662 = vand.u32 %v388, 4294901760
          %v663 = vsub.f32 %v388, %v662
          %664 = vmatpush1.msra.mxu0 %v663
          %665 = vmatprep.subr.mxu0 0.0
          %v666 = vand.u32 %v389, 4294901760
          %v667 = vsub.f32 %v389, %v666
          %668 = vmatpush1.msra.mxu0 %v667
          %669 = vmatprep.subr.mxu0 0.0
          %v670 = vand.u32 %v390, 4294901760
          %v671 = vsub.f32 %v390, %v670
          %672 = vmatpush1.msra.mxu0 %v671
          %673 = vmatprep.subr.mxu0 0.0
          %v674 = vand.u32 %v391, 4294901760
          %v675 = vsub.f32 %v391, %v674
          %676 = vmatpush1.msra.mxu0 %v675
          %677 = vmatprep.subr.mxu0 0.0
          %v678 = vand.u32 %v392, 4294901760
          %v679 = vsub.f32 %v392, %v678
          %680 = vmatpush1.msra.mxu0 %v679
          %681 = vmatprep.subr.mxu0 0.0
          %v682 = vand.u32 %v393, 4294901760
          %v683 = vsub.f32 %v393, %v682
          %684 = vmatpush1.msra.mxu0 %v683
          %685 = vmatprep.subr.mxu0 0.0
          %v686 = vand.u32 %v394, 4294901760
          %v687 = vsub.f32 %v394, %v686
          %688 = vmatpush1.msra.mxu0 %v687
          %689 = vmatprep.subr.mxu0 0.0
          %v690 = vand.u32 %v395, 4294901760
          %v691 = vsub.f32 %v395, %v690
          %692 = vmatpush1.msra.mxu0 %v691
          %693 = vmatprep.subr.mxu0 0.0
          %v694 = vand.u32 %v396, 4294901760
          %v695 = vsub.f32 %v396, %v694
          %696 = vmatpush1.msra.mxu0 %v695
          %697 = vmatprep.subr.mxu0 0.0
          %v698 = vand.u32 %v397, 4294901760
          %v699 = vsub.f32 %v397, %v698
          %700 = vmatpush1.msra.mxu0 %v699
          %701 = vmatprep.subr.mxu0 0.0
          %v702 = vand.u32 %v398, 4294901760
          %v703 = vsub.f32 %v398, %v702
          %704 = vmatpush1.msra.mxu0 %v703
          %705 = vmatprep.subr.mxu0 0.0
          %706 = vmatpush1.msra.mxu0 0.0
          %707 = vmatprep.subr.mxu0 0.0
          %708 = vmatpush1.msra.mxu0 0.0
          %709 = vmatprep.subr.mxu0 0.0
          %710 = vmatpush1.msra.mxu0 0.0
          %711 = vmatprep.subr.mxu0 0.0
          %712 = vmatpush1.msra.mxu0 0.0
          %713 = vmatprep.subr.mxu0 0.0
          %714 = vmatpush1.msra.mxu0 0.0
          %715 = vmatprep.subr.mxu0 0.0
          %716 = vmatpush1.msra.mxu0 0.0
          %717 = vmatprep.subr.mxu0 0.0
          %718 = vmatpush1.msra.mxu0 0.0
          %719 = vmatprep.subr.mxu0 0.0
          %720 = vmatpush1.msra.mxu0 0.0
          %721 = vmatprep.subr.mxu0 0.0
          %722 = vmatpush1.msra.mxu0 0.0
          %723 = vmatprep.subr.mxu0 0.0
          %724 = vmatpush1.msra.mxu0 0.0
          %725 = vmatprep.subr.mxu0 0.0
          %726 = vmatpush1.msra.mxu0 0.0
          %727 = vmatprep.subr.mxu0 0.0
          %728 = vmatpush1.msra.mxu0 0.0
          %729 = vmatprep.subr.mxu0 0.0
          %730 = vmatpush1.msra.mxu0 0.0
          %731 = vmatprep.subr.mxu0 0.0
          %732 = vmatpush1.msra.mxu0 0.0
          %733 = vmatprep.subr.mxu0 0.0
          %734 = vmatpush1.msra.mxu0 0.0
          %735 = vmatprep.subr.mxu0 0.0
          %736 = vmatpush1.msra.mxu0 0.0
          %737 = vmatprep.mubr.f32.mxu0 0.0
          %v738 = vand.u32 %v375, 4294901760
          %v739 = vsub.f32 %v375, %v738
          %740 = vmatmul.mubr.f32.gmra.mrb[0].mxu0 %v739
          %v741 = vpop.f32.mrb[0].mxu0
          %v742 = vadd.f32 %v638, %v741
          %v743 = vpop.f32.mrb[0].mxu0
          %744 = vdwg.mxu0
          %745 = vmatprep.subr.mxu0 0.0
          %v746 = vand.u32 %v383, 4294901760
          %747 = vmatpush1.msra.mxu0 %v746
          %748 = vmatprep.subr.mxu0 0.0
          %v749 = vand.u32 %v384, 4294901760
          %750 = vmatpush1.msra.mxu0 %v749
          %751 = vmatprep.subr.mxu0 0.0
          %v752 = vand.u32 %v385, 4294901760
          %753 = vmatpush1.msra.mxu0 %v752
          %754 = vmatprep.subr.mxu0 0.0
          %v755 = vand.u32 %v386, 4294901760
          %756 = vmatpush1.msra.mxu0 %v755
          %757 = vmatprep.subr.mxu0 0.0
          %v758 = vand.u32 %v387, 4294901760
          %759 = vmatpush1.msra.mxu0 %v758
          %760 = vmatprep.subr.mxu0 0.0
          %v761 = vand.u32 %v388, 4294901760
          %762 = vmatpush1.msra.mxu0 %v761
          %763 = vmatprep.subr.mxu0 0.0
          %v764 = vand.u32 %v389, 4294901760
          %765 = vmatpush1.msra.mxu0 %v764
          %766 = vmatprep.subr.mxu0 0.0
          %v767 = vand.u32 %v390, 4294901760
          %768 = vmatpush1.msra.mxu0 %v767
          %769 = vmatprep.subr.mxu0 0.0
          %v770 = vand.u32 %v391, 4294901760
          %771 = vmatpush1.msra.mxu0 %v770
          %772 = vmatprep.subr.mxu0 0.0
          %v773 = vand.u32 %v392, 4294901760
          %774 = vmatpush1.msra.mxu0 %v773
          %775 = vmatprep.subr.mxu0 0.0
          %v776 = vand.u32 %v393, 4294901760
          %777 = vmatpush1.msra.mxu0 %v776
          %778 = vmatprep.subr.mxu0 0.0
          %v779 = vand.u32 %v394, 4294901760
          %780 = vmatpush1.msra.mxu0 %v779
          %781 = vmatprep.subr.mxu0 0.0
          %v782 = vand.u32 %v395, 4294901760
          %783 = vmatpush1.msra.mxu0 %v782
          %784 = vmatprep.subr.mxu0 0.0
          %v785 = vand.u32 %v396, 4294901760
          %786 = vmatpush1.msra.mxu0 %v785
          %787 = vmatprep.subr.mxu0 0.0
          %v788 = vand.u32 %v397, 4294901760
          %789 = vmatpush1.msra.mxu0 %v788
          %790 = vmatprep.subr.mxu0 0.0
          %v791 = vand.u32 %v398, 4294901760
          %792 = vmatpush1.msra.mxu0 %v791
          %793 = vmatprep.subr.mxu0 0.0
          %794 = vmatpush1.msra.mxu0 0.0
          %795 = vmatprep.subr.mxu0 0.0
          %796 = vmatpush1.msra.mxu0 0.0
          %797 = vmatprep.subr.mxu0 0.0
          %798 = vmatpush1.msra.mxu0 0.0
          %799 = vmatprep.subr.mxu0 0.0
          %800 = vmatpush1.msra.mxu0 0.0
          %801 = vmatprep.subr.mxu0 0.0
          %802 = vmatpush1.msra.mxu0 0.0
          %803 = vmatprep.subr.mxu0 0.0
          %804 = vmatpush1.msra.mxu0 0.0
          %805 = vmatprep.subr.mxu0 0.0
          %806 = vmatpush1.msra.mxu0 0.0
          %807 = vmatprep.subr.mxu0 0.0
          %808 = vmatpush1.msra.mxu0 0.0
          %809 = vmatprep.subr.mxu0 0.0
          %810 = vmatpush1.msra.mxu0 0.0
          %811 = vmatprep.subr.mxu0 0.0
          %812 = vmatpush1.msra.mxu0 0.0
          %813 = vmatprep.subr.mxu0 0.0
          %814 = vmatpush1.msra.mxu0 0.0
          %815 = vmatprep.subr.mxu0 0.0
          %816 = vmatpush1.msra.mxu0 0.0
          %817 = vmatprep.subr.mxu0 0.0
          %818 = vmatpush1.msra.mxu0 0.0
          %819 = vmatprep.subr.mxu0 0.0
          %820 = vmatpush1.msra.mxu0 0.0
          %821 = vmatprep.subr.mxu0 0.0
          %822 = vmatpush1.msra.mxu0 0.0
          %823 = vmatprep.subr.mxu0 0.0
          %824 = vmatpush1.msra.mxu0 0.0
          %825 = vmatprep.mubr.f32.mxu0 0.0
          %v826 = vand.u32 %v375, 4294901760
          %v827 = vsub.f32 %v375, %v826
          %v828 = vand.u32 %v827, 4294901760
          %829 = vmatmul.mubr.f32.gmra.mrb[0].mxu0 %v828
          %v830 = vpop.f32.mrb[0].mxu0
          %v831 = vadd.f32 %v742, %v830
          %v832 = vpop.f32.mrb[0].mxu0
          %833 = vdwg.mxu0
          %834 = vmatprep.subr.mxu0 0.0
          %v835 = vand.u32 %v383, 4294901760
          %v836 = vsub.f32 %v383, %v835
          %v837 = vand.u32 %v836, 4294901760
          %838 = vmatpush1.msra.mxu0 %v837
          %839 = vmatprep.subr.mxu0 0.0
          %v840 = vand.u32 %v384, 4294901760
          %v841 = vsub.f32 %v384, %v840
          %v842 = vand.u32 %v841, 4294901760
          %843 = vmatpush1.msra.mxu0 %v842
          %844 = vmatprep.subr.mxu0 0.0
          %v845 = vand.u32 %v385, 4294901760
          %v846 = vsub.f32 %v385, %v845
          %v847 = vand.u32 %v846, 4294901760
          %848 = vmatpush1.msra.mxu0 %v847
          %849 = vmatprep.subr.mxu0 0.0
          %v850 = vand.u32 %v386, 4294901760
          %v851 = vsub.f32 %v386, %v850
          %v852 = vand.u32 %v851, 4294901760
          %853 = vmatpush1.msra.mxu0 %v852
          %854 = vmatprep.subr.mxu0 0.0
          %v855 = vand.u32 %v387, 4294901760
          %v856 = vsub.f32 %v387, %v855
          %v857 = vand.u32 %v856, 4294901760
          %858 = vmatpush1.msra.mxu0 %v857
          %859 = vmatprep.subr.mxu0 0.0
          %v860 = vand.u32 %v388, 4294901760
          %v861 = vsub.f32 %v388, %v860
          %v862 = vand.u32 %v861, 4294901760
          %863 = vmatpush1.msra.mxu0 %v862
          %864 = vmatprep.subr.mxu0 0.0
          %v865 = vand.u32 %v389, 4294901760
          %v866 = vsub.f32 %v389, %v865
          %v867 = vand.u32 %v866, 4294901760
          %868 = vmatpush1.msra.mxu0 %v867
          %869 = vmatprep.subr.mxu0 0.0
          %v870 = vand.u32 %v390, 4294901760
          %v871 = vsub.f32 %v390, %v870
          %v872 = vand.u32 %v871, 4294901760
          %873 = vmatpush1.msra.mxu0 %v872
          %874 = vmatprep.subr.mxu0 0.0
          %v875 = vand.u32 %v391, 4294901760
          %v876 = vsub.f32 %v391, %v875
          %v877 = vand.u32 %v876, 4294901760
          %878 = vmatpush1.msra.mxu0 %v877
          %879 = vmatprep.subr.mxu0 0.0
          %v880 = vand.u32 %v392, 4294901760
          %v881 = vsub.f32 %v392, %v880
          %v882 = vand.u32 %v881, 4294901760
          %883 = vmatpush1.msra.mxu0 %v882
          %884 = vmatprep.subr.mxu0 0.0
          %v885 = vand.u32 %v393, 4294901760
          %v886 = vsub.f32 %v393, %v885
          %v887 = vand.u32 %v886, 4294901760
          %888 = vmatpush1.msra.mxu0 %v887
          %889 = vmatprep.subr.mxu0 0.0
          %v890 = vand.u32 %v394, 4294901760
          %v891 = vsub.f32 %v394, %v890
          %v892 = vand.u32 %v891, 4294901760
          %893 = vmatpush1.msra.mxu0 %v892
          %894 = vmatprep.subr.mxu0 0.0
          %v895 = vand.u32 %v395, 4294901760
          %v896 = vsub.f32 %v395, %v895
          %v897 = vand.u32 %v896, 4294901760
          %898 = vmatpush1.msra.mxu0 %v897
          %899 = vmatprep.subr.mxu0 0.0
          %v900 = vand.u32 %v396, 4294901760
          %v901 = vsub.f32 %v396, %v900
          %v902 = vand.u32 %v901, 4294901760
          %903 = vmatpush1.msra.mxu0 %v902
          %904 = vmatprep.subr.mxu0 0.0
          %v905 = vand.u32 %v397, 4294901760
          %v906 = vsub.f32 %v397, %v905
          %v907 = vand.u32 %v906, 4294901760
          %908 = vmatpush1.msra.mxu0 %v907
          %909 = vmatprep.subr.mxu0 0.0
          %v910 = vand.u32 %v398, 4294901760
          %v911 = vsub.f32 %v398, %v910
          %v912 = vand.u32 %v911, 4294901760
          %913 = vmatpush1.msra.mxu0 %v912
          %914 = vmatprep.subr.mxu0 0.0
          %915 = vmatpush1.msra.mxu0 0.0
          %916 = vmatprep.subr.mxu0 0.0
          %917 = vmatpush1.msra.mxu0 0.0
          %918 = vmatprep.subr.mxu0 0.0
          %919 = vmatpush1.msra.mxu0 0.0
          %920 = vmatprep.subr.mxu0 0.0
          %921 = vmatpush1.msra.mxu0 0.0
          %922 = vmatprep.subr.mxu0 0.0
          %923 = vmatpush1.msra.mxu0 0.0
          %924 = vmatprep.subr.mxu0 0.0
          %925 = vmatpush1.msra.mxu0 0.0
          %926 = vmatprep.subr.mxu0 0.0
          %927 = vmatpush1.msra.mxu0 0.0
          %928 = vmatprep.subr.mxu0 0.0
          %929 = vmatpush1.msra.mxu0 0.0
          %930 = vmatprep.subr.mxu0 0.0
          %931 = vmatpush1.msra.mxu0 0.0
          %932 = vmatprep.subr.mxu0 0.0
          %933 = vmatpush1.msra.mxu0 0.0
          %934 = vmatprep.subr.mxu0 0.0
          %935 = vmatpush1.msra.mxu0 0.0
          %936 = vmatprep.subr.mxu0 0.0
          %937 = vmatpush1.msra.mxu0 0.0
          %938 = vmatprep.subr.mxu0 0.0
          %939 = vmatpush1.msra.mxu0 0.0
          %940 = vmatprep.subr.mxu0 0.0
          %941 = vmatpush1.msra.mxu0 0.0
          %942 = vmatprep.subr.mxu0 0.0
          %943 = vmatpush1.msra.mxu0 0.0
          %944 = vmatprep.subr.mxu0 0.0
          %945 = vmatpush1.msra.mxu0 0.0
          %946 = vmatprep.mubr.f32.mxu0 0.0
          %v947 = vand.u32 %v375, 4294901760
          %948 = vmatmul.mubr.f32.gmra.mrb[0].mxu0 %v947
          %v949 = vpop.f32.mrb[0].mxu0
          %v950 = vadd.f32 %v831, %v949
          %v951 = vpop.f32.mrb[0].mxu0
          %952 = vdwg.mxu0
          %953 = vmatprep.subr.mxu0 0.0
          %v954 = vand.u32 %v383, 4294901760
          %955 = vmatpush1.msra.mxu0 %v954
          %956 = vmatprep.subr.mxu0 0.0
          %v957 = vand.u32 %v384, 4294901760
          %958 = vmatpush1.msra.mxu0 %v957
          %959 = vmatprep.subr.mxu0 0.0
          %v960 = vand.u32 %v385, 4294901760
          %961 = vmatpush1.msra.mxu0 %v960
          %962 = vmatprep.subr.mxu0 0.0
          %v963 = vand.u32 %v386, 4294901760
          %964 = vmatpush1.msra.mxu0 %v963
          %965 = vmatprep.subr.mxu0 0.0
          %v966 = vand.u32 %v387, 4294901760
          %967 = vmatpush1.msra.mxu0 %v966
          %968 = vmatprep.subr.mxu0 0.0
          %v969 = vand.u32 %v388, 4294901760
          %970 = vmatpush1.msra.mxu0 %v969
          %971 = vmatprep.subr.mxu0 0.0
          %v972 = vand.u32 %v389, 4294901760
          %973 = vmatpush1.msra.mxu0 %v972
          %974 = vmatprep.subr.mxu0 0.0
          %v975 = vand.u32 %v390, 4294901760
          %976 = vmatpush1.msra.mxu0 %v975
          %977 = vmatprep.subr.mxu0 0.0
          %v978 = vand.u32 %v391, 4294901760
          %979 = vmatpush1.msra.mxu0 %v978
          %980 = vmatprep.subr.mxu0 0.0
          %v981 = vand.u32 %v392, 4294901760
          %982 = vmatpush1.msra.mxu0 %v981
          %983 = vmatprep.subr.mxu0 0.0
          %v984 = vand.u32 %v393, 4294901760
          %985 = vmatpush1.msra.mxu0 %v984
          %986 = vmatprep.subr.mxu0 0.0
          %v987 = vand.u32 %v394, 4294901760
          %988 = vmatpush1.msra.mxu0 %v987
          %989 = vmatprep.subr.mxu0 0.0
          %v990 = vand.u32 %v395, 4294901760
          %991 = vmatpush1.msra.mxu0 %v990
          %992 = vmatprep.subr.mxu0 0.0
          %v993 = vand.u32 %v396, 4294901760
          %994 = vmatpush1.msra.mxu0 %v993
          %995 = vmatprep.subr.mxu0 0.0
          %v996 = vand.u32 %v397, 4294901760
          %997 = vmatpush1.msra.mxu0 %v996
          %998 = vmatprep.subr.mxu0 0.0
          %v999 = vand.u32 %v398, 4294901760
          %1000 = vmatpush1.msra.mxu0 %v999
          %1001 = vmatprep.subr.mxu0 0.0
          %1002 = vmatpush1.msra.mxu0 0.0
          %1003 = vmatprep.subr.mxu0 0.0
          %1004 = vmatpush1.msra.mxu0 0.0
          %1005 = vmatprep.subr.mxu0 0.0
          %1006 = vmatpush1.msra.mxu0 0.0
          %1007 = vmatprep.subr.mxu0 0.0
          %1008 = vmatpush1.msra.mxu0 0.0
          %1009 = vmatprep.subr.mxu0 0.0
          %1010 = vmatpush1.msra.mxu0 0.0
          %1011 = vmatprep.subr.mxu0 0.0
          %1012 = vmatpush1.msra.mxu0 0.0
          %1013 = vmatprep.subr.mxu0 0.0
          %1014 = vmatpush1.msra.mxu0 0.0
          %1015 = vmatprep.subr.mxu0 0.0
          %1016 = vmatpush1.msra.mxu0 0.0
          %1017 = vmatprep.subr.mxu0 0.0
          %1018 = vmatpush1.msra.mxu0 0.0
          %1019 = vmatprep.subr.mxu0 0.0
          %1020 = vmatpush1.msra.mxu0 0.0
          %1021 = vmatprep.subr.mxu0 0.0
          %1022 = vmatpush1.msra.mxu0 0.0
          %1023 = vmatprep.subr.mxu0 0.0
          %1024 = vmatpush1.msra.mxu0 0.0
          %1025 = vmatprep.subr.mxu0 0.0
          %1026 = vmatpush1.msra.mxu0 0.0
          %1027 = vmatprep.subr.mxu0 0.0
          %1028 = vmatpush1.msra.mxu0 0.0
          %1029 = vmatprep.subr.mxu0 0.0
          %1030 = vmatpush1.msra.mxu0 0.0
          %1031 = vmatprep.subr.mxu0 0.0
          %1032 = vmatpush1.msra.mxu0 0.0
          %1033 = vmatprep.mubr.f32.mxu0 0.0
          %v1034 = vand.u32 %v375, 4294901760
          %1035 = vmatmul.mubr.f32.gmra.mrb[0].mxu0 %v1034
          %v1036 = vpop.f32.mrb[0].mxu0
          %v1037 = vadd.f32 %v950, %v1036
          %v1038 = vpop.f32.mrb[0].mxu0
          %1039 = vdwg.mxu0
          %v1040 = vadd.f32 %v382, %v1037
          %1041 = vst [vmem:[%s322] sm:$0xff] %v1040
        $region48: #{tpu_custom_call.1} parent=31 // pred_fallthru
          _
        // Predicated region
        $region49: #{tpu_custom_call.1} parent=31 // pred_check
          %p1042 = pneg %p351
        $region50: #{tpu_custom_call.1} parent=31 // pred_check_branch
          %1044 = sbr.rel (%p1042) target = $region52
        $region51: #{tpu_custom_call.1} parent=31 // pred_region
          %v1045 = vld [vmem:[%s322] sm:$0xff]
          %v1046 = vld [vmem:[#allocation2] sm:$0xff]
          %v1047 = vmax.f32 %v1046, 1.0
          %1049 = vset.pattern.permute.xlu0 0
          %1050 = vperm.xlu0 %1049, %v1047
          %v1051 = vpop.permute.xlu0 %1050
          %v1053 = vrcp.pop %v1051
          %v1054 = vmul.f32 %v1045, %v1053
          %v1055 = vld [vmem:[%s284] sm:$0xff]
          %v1056 = vadd.f32 %v1054, %v1055
          %v1057 = vmul.f32 %v1056, 0.5
          %1058 = vst [vmem:[%s322] sm:$0xff] %v1057
        $region52: #{tpu_custom_call.1} parent=31 // pred_fallthru
          _
        %s1059 = sand.u32 %s163, 1
        %s1060 = scalar_lea.sflag [#allocation8], %s1059
        %s1061 = sand.u32 %s163, 1
        %s1062 = smul.addr %s1061, 8
        %s1063 = scalar_lea.vmem [#allocation11], %s1062
        // Predicated region
        $region53: #{tpu_custom_call.1} parent=31 // pred_check
          %p1064 = pneg %p173
        $region54: #{tpu_custom_call.1} parent=31 // pred_check_branch
          %1066 = sbr.rel (%p1064) target = $region56
        $region55: #{tpu_custom_call.1} parent=31 // pred_region
          %s1068 = ssub.s32 128, 128
          %1069 = vsyncadd %s1060, %s1068
          %s1070 = smul.addr %s37, 128
          %s1071 = scalar_lea.hbm %s5, %s1070
          %s1073 = sshll.u32 %s1063, 4
          %s1074 = int_to_ptr.vmem [resolvable:$true] %s1073
          %1076 = dma.vmem_to_hbm [thread:$0]  %s1074, 128, %s1071, %s1060
        $region56: #{tpu_custom_call.1} parent=31 // pred_fallthru
          _
      $region32: #{tpu_custom_call.1} parent=5 // pred_fallthru
        _
      %p1077 = scmp.le.s32.totalorder 2, %s28
      // Predicated region
      $region57: #{tpu_custom_call.1} parent=5 // pred_check
        %p1078 = pneg %p1077
      $region58: #{tpu_custom_call.1} parent=5 // pred_check_branch
        %1080 = sbr.rel (%p1078) target = $region60
      $region59: #{tpu_custom_call.1} parent=5 // pred_region
        %s1081 = ssub.s32 %s28, 2
        // Predicated region
        $region61: #{tpu_custom_call.1} parent=59 // pred_check
          %p1082 = pneg %p179
        $region62: #{tpu_custom_call.1} parent=59 // pred_check_branch
          %1084 = sbr.rel (%p1082) target = $region64
        $region63: #{tpu_custom_call.1} parent=59 // pred_region
          %s1085 = sand.u32 %s164, 1
          %s1086 = scalar_lea.sflag [#allocation8], %s1085
          %s1087 = sand.u32 %s164, 1
          %s1088 = smul.addr %s1087, 8
          %s1089 = scalar_lea.vmem [#allocation11], %s1088
          %1090 = dma.done %s1086, 128
        $region64: #{tpu_custom_call.1} parent=59 // pred_fallthru
          _
      $region60: #{tpu_custom_call.1} parent=5 // pred_fallthru
        _
    $region6: #{tpu_custom_call.1} parent=1 // loop_footer
      %s32 = sadd.s32 1, %s28
    $region7: #{tpu_custom_call.1} parent=1 // loop_footer_branch
      %27 = sbr.rel target = $region3
    $region8: #{tpu_custom_call.1} parent=1 // loop_exit
      _
    %1091 = vsyncpa [#allocation7], 1
    %s1092 = scalar_lea.sflag [#allocation7], 1
    %1093 = vsyncpa %s1092, 1
    %1094 = vsyncpa [#allocation10], 1
    %s1095 = scalar_lea.sflag [#allocation10], 1
    %1096 = vsyncpa %s1095, 1
    %1097 = vsyncpa [#allocation8], 1
    %s1098 = scalar_lea.sflag [#allocation8], 1
    %1099 = vsyncpa %s1098, 1

</llo_original>
